<compile_context>
chip_gen: v7x
topology: tpu7x:2x2x1
jax: 0.10.0
libtpu: 0.0.40
codegen_flags: <defaults>
</compile_context>

<pallas_src>
import jax
import jax.numpy as jnp
from jax.experimental import pallas as pl
from jax.experimental.pallas import tpu as pltpu

_INV_SQRT2 = 0.7071067811865476


def _gelu_exact_f32(x):
    # Exact GELU: x * 0.5 * (1 + erf(x / sqrt(2)))  (same as torch nn.GELU() default).
    return x * 0.5 * (1.0 + jax.lax.erf(x * _INV_SQRT2))


def _is_v7x():
    try:
        return "v7" in jax.devices()[0].device_kind.lower()
    except Exception:
        return False


def _core_parallel_available():
    return _is_v7x() and hasattr(pltpu, "CORE_PARALLEL")


# ----------------------------------------------------------------------------
# Fused Linear + bias + exact-GELU  (the `ebm[0]` Linear + `ebm[1]` GELU)
# ----------------------------------------------------------------------------
def _linear_gelu_kernel(x_ref, w_ref, b_ref, o_ref, acc_ref):
    k = pl.program_id(2)

    @pl.when(k == 0)
    def _():
        acc_ref[...] = jnp.zeros_like(acc_ref)

    acc_ref[...] += jnp.dot(x_ref[...], w_ref[...],
                            preferred_element_type=jnp.float32)

    @pl.when(k == pl.num_programs(2) - 1)
    def _():
        # GELU epilogue on the resident f32 accumulator: the activation never
        # hits HBM as a separate tensor.
        y = acc_ref[...] + b_ref[...].astype(jnp.float32)
        o_ref[...] = _gelu_exact_f32(y).astype(o_ref.dtype)


def _pick_tile(dim, candidates):
    # Largest candidate that divides `dim`; otherwise the full dim (a block equal
    # to the full array dim is always a legal block shape).
    for c in candidates:
        if dim >= c and dim % c == 0:
            return c
    return dim


def linear_gelu_pallas(x, w, b, *, out_dtype=None):
    """gelu(x @ w + b) with exact (erf) GELU, fused in one Pallas kernel.

    x: (M, K); w: (K, N)  -- i.e. torch Linear `weight.T`; b: (N,)
    """
    M, K = x.shape
    K2, N = w.shape
    assert K2 == K and b.shape == (N,)
    out_dtype = out_dtype or x.dtype

    tm = _pick_tile(M, (256, 128, 64, 32, 16, 8))
    tn = _pick_tile(N, (512, 256, 128))
    tk = _pick_tile(K, (512, 256, 128))
    grid = (M // tm, N // tn, K // tk)

    # Reduction axis (k) last + "arbitrary"; independent axes parallel.  On v7x,
    # promote one parallel axis with >= 2 steps to CORE_PARALLEL so both
    # TensorCores are used.
    sem = [pltpu.PARALLEL, pltpu.PARALLEL, pltpu.ARBITRARY]
    if _core_parallel_available():
        if grid[0] >= 2:
            sem[0] = pltpu.CORE_PARALLEL
        elif grid[1] >= 2:
            sem[1] = pltpu.CORE_PARALLEL

    b2d = jnp.reshape(b, (1, N))
    itemsize = jnp.dtype(x.dtype).itemsize

    return pl.pallas_call(
        _linear_gelu_kernel,
        out_shape=jax.ShapeDtypeStruct((M, N), out_dtype),
        grid_spec=pltpu.PrefetchScalarGridSpec(
            num_scalar_prefetch=0,
            grid=grid,
            in_specs=[
                pl.BlockSpec((tm, tk), lambda i, j, k: (i, k)),
                pl.BlockSpec((tk, tn), lambda i, j, k: (k, j)),
                pl.BlockSpec((1, tn), lambda i, j, k: (0, j)),
            ],
            out_specs=pl.BlockSpec((tm, tn), lambda i, j, k: (i, j)),
            scratch_shapes=[pltpu.VMEM((tm, tn), jnp.float32)],
        ),
        compiler_params=pltpu.CompilerParams(dimension_semantics=tuple(sem)),
        cost_estimate=pl.CostEstimate(
            flops=2 * M * K * N + 10 * M * N,
            transcendentals=M * N,
            bytes_accessed=(M * K + K * N + N + M * N) * itemsize,
        ),
    )(x, w, b2d)


def ebm_forward_pallas(z, w1, b1, w2, b2, *, cls_output=False, temperature=1.0):
    """IBEBM.ebm_forward: Linear(z_dim, dec_hidden) -> GELU -> Linear(dec_hidden, num_cls),
    optionally followed by temperature * logsumexp(logits / temperature, axis=1).

    w1 = ebm[0].weight.T, b1 = ebm[0].bias; w2 = ebm[2].weight.T, b2 = ebm[2].bias.
    """
    h = linear_gelu_pallas(z, w1, b1)  # fused Linear + exact GELU (no activation HBM round-trip)
    # num_cls is a handful of lanes; the second Linear + logsumexp are left to XLA.
    logits = jnp.dot(h, w2, preferred_element_type=jnp.float32) + b2
    if cls_output:
        return logits.astype(z.dtype)
    lse = temperature * jax.scipy.special.logsumexp(logits / temperature, axis=1)
    return lse.astype(z.dtype)


# ----------------------------------------------------------------------------
# Standalone exact-GELU (for activations whose producer is not a Pallas matmul)
# ----------------------------------------------------------------------------
def _gelu_kernel(x_ref, o_ref):
    # f32 erf polynomial; bf16 I/O already halves HBM traffic, which is the
    # binding resource for this standalone pass on v5e/v6e.
    x = x_ref[...].astype(jnp.float32)
    o_ref[...] = _gelu_exact_f32(x).astype(o_ref.dtype)


_LANE_CANDIDATES = (4096, 2048, 1024, 512, 256, 128)
_TARGET_BLOCK_BYTES = 2 * 1024 * 1024   # ~2 MiB blocks fit default scoped VMEM everywhere
_SMALL_INPUT_ELEMS = 128 * 1024         # below this, XLA's fused GELU wins on dispatch cost


def gelu_pallas(x, *, donate_input=False):
    orig_shape = x.shape
    n = x.size
    if n == 0:
        return x

    lane = next((c for c in _LANE_CANDIDATES if n % c == 0), None)
    if n < _SMALL_INPUT_ELEMS or lane is None:
        # Small or ragged element counts: XLA's elementwise GELU is already at the
        # HBM roofline; avoids pallas dispatch overhead and any pad copy.
        return jax.nn.gelu(x.astype(jnp.float32), approximate=False).astype(x.dtype)

    itemsize = jnp.dtype(x.dtype).itemsize
    sub = max(8, 32 // itemsize)  # sublane pack: 8 (f32), 16 (bf16/f16), 32 (int8)
    rows = n // lane
    x2d = jnp.reshape(x, (rows, lane))

    br = max(sub, (_TARGET_BLOCK_BYTES // (lane * itemsize)) // sub * sub)
    block_rows = rows if rows <= br else br
    grid = (pl.cdiv(rows, block_rows),)

    sem = pltpu.PARALLEL
    if _core_parallel_available() and grid[0] >= 2:
        sem = pltpu.CORE_PARALLEL  # actually splits the grid across v7x's 2 TCs

    out2d = pl.pallas_call(
        _gelu_kernel,
        out_shape=jax.ShapeDtypeStruct((rows, lane), x.dtype),
        grid_spec=pltpu.PrefetchScalarGridSpec(
            num_scalar_prefetch=0,
            grid=grid,
            in_specs=[pl.BlockSpec((block_rows, lane), lambda i: (i, 0))],
            out_specs=pl.BlockSpec((block_rows, lane), lambda i: (i, 0)),
        ),
        compiler_params=pltpu.CompilerParams(dimension_semantics=(sem,)),
        cost_estimate=pl.CostEstimate(
            flops=10 * n, transcendentals=n, bytes_accessed=2 * n * itemsize),
        input_output_aliases={0: 0} if donate_input else {},
    )(x2d)
    return jnp.reshape(out2d, orig_shape)


if __name__ == "__main__":
    key = jax.random.PRNGKey(0)
    ks = jax.random.split(key, 8)

    # Small shapes consistent with the module's `ebm` head.
    batch, z_dim, dec_hidden, num_cls = 8, 32, 64, 4
    z = jax.random.normal(ks[0], (batch, z_dim), dtype=jnp.float32)
    w1 = jax.random.normal(ks[1], (z_dim, dec_hidden), dtype=jnp.float32) * 0.1
    b1 = jax.random.normal(ks[2], (dec_hidden,), dtype=jnp.float32) * 0.1
    w2 = jax.random.normal(ks[3], (dec_hidden, num_cls), dtype=jnp.float32) * 0.1
    b2 = jax.random.normal(ks[4], (num_cls,), dtype=jnp.float32) * 0.1

    # 1) Fused Linear + exact-GELU (the activation producer now owns the GELU).
    h = jax.block_until_ready(linear_gelu_pallas(z, w1, b1))
    h_ref = jax.nn.gelu(z @ w1 + b1, approximate=False)
    assert h.shape == (batch, dec_hidden) and h.dtype == z.dtype
    assert jnp.allclose(h, h_ref, atol=1e-3, rtol=1e-3)

    # 2) Full ebm_forward energy (logsumexp path) against a plain-JAX reference.
    e = jax.block_until_ready(ebm_forward_pallas(z, w1, b1, w2, b2, temperature=1.0))
    e_ref = jax.scipy.special.logsumexp(h_ref @ w2 + b2, axis=1)
    assert e.shape == (batch,)
    assert jnp.allclose(e, e_ref, atol=1e-3, rtol=1e-3)

    # 3) Larger shapes: exercises multi-step M and K tiling (k-axis accumulate + epilogue).
    M2, K2, N2 = 512, 1024, 256
    xb = jax.random.normal(ks[5], (M2, K2), dtype=jnp.float32) * 0.05
    wb = jax.random.normal(ks[6], (K2, N2), dtype=jnp.float32) * 0.05
    bb = jax.random.normal(ks[7], (N2,), dtype=jnp.float32) * 0.05
    yb = jax.block_until_ready(linear_gelu_pallas(xb, wb, bb))
    yb_ref = jax.nn.gelu(
        jnp.dot(xb, wb, precision=jax.lax.Precision.HIGHEST) + bb, approximate=False)
    assert jnp.allclose(yb, yb_ref, atol=2e-3, rtol=2e-3)

    # 4) Standalone GELU, Pallas path (>= 128K elements).
    xa = jax.random.normal(ks[0], (512, 512), dtype=jnp.float32)
    ya = jax.block_until_ready(gelu_pallas(xa))
    assert jnp.allclose(ya, jax.nn.gelu(xa, approximate=False), atol=1e-5, rtol=1e-5)

    # 5) Tiny / ragged inputs take the XLA fast path (no pad copy, no pallas dispatch).
    xt = jax.random.normal(ks[1], (2, 4, 16, 16), dtype=jnp.float32)
    yt = jax.block_until_ready(gelu_pallas(xt))
    assert jnp.allclose(yt, jax.nn.gelu(xt, approximate=False), atol=1e-5, rtol=1e-5)
    xo = jax.random.normal(ks[2], (5, 37), dtype=jnp.float32)
    yo = jax.block_until_ready(gelu_pallas(xo))
    assert jnp.allclose(yo, jax.nn.gelu(xo, approximate=False), atol=1e-5, rtol=1e-5)

    # 6) bf16 path: native-width HBM I/O, f32 erf inside the kernel.
    xbf = jax.random.normal(ks[3], (256, 1024), dtype=jnp.bfloat16)
    ybf = jax.block_until_ready(gelu_pallas(xbf))
    ybf_ref = jax.nn.gelu(xbf.astype(jnp.float32), approximate=False).astype(jnp.bfloat16)
    assert ybf.dtype == jnp.bfloat16
    assert jnp.allclose(ybf.astype(jnp.float32), ybf_ref.astype(jnp.float32),
                        atol=2e-2, rtol=2e-2)

    print("KERNEL_OK")
</pallas_src>

<mosaic_0001>
module attributes {stable_mosaic.version = 11 : i64} {
  func.func @_linear_gelu_kernel(%arg0: i32, %arg1: i32, %arg2: i32, %arg3: memref<8x32xf32, #tpu.memory_space<vmem>>, %arg4: memref<32x64xf32, #tpu.memory_space<vmem>>, %arg5: memref<1x64xf32, #tpu.memory_space<vmem>>, %arg6: memref<8x64xf32, #tpu.memory_space<vmem>>, %arg7: memref<8x64xf32, #tpu.memory_space<vmem>>) attributes {dimension_semantics = [#tpu.dimension_semantics<parallel>, #tpu.dimension_semantics<parallel>, #tpu.dimension_semantics<arbitrary>], iteration_bounds = array<i64: 1, 1, 1>, scalar_prefetch = 0 : i64, scratch_operands = 1 : i64, tpu.core_type = #tpu.core_type<tc>, window_params = [{transform_indices = @transform_0, window_bounds = array<i64: 8, 32>}, {transform_indices = @transform_1, window_bounds = array<i64: 32, 64>}, {transform_indices = @transform_2, window_bounds = array<i64: 1, 64>}, {transform_indices = @transform_3, window_bounds = array<i64: 8, 64>}]} {
    %c0_i32 = arith.constant 0 : i32
    %0 = arith.cmpi eq, %arg2, %c0_i32 : i32
    %1 = arith.extui %0 : i1 to i32
    %c0_i32_0 = arith.constant 0 : i32
    %2 = arith.cmpi ne, %1, %c0_i32_0 : i32
    scf.if %2 {
      %cst_10 = arith.constant 0.000000e+00 : f32
      %12 = vector.broadcast %cst_10 : f32 to vector<8x64xf32>
      %c0_11 = arith.constant 0 : index
      %c0_12 = arith.constant 0 : index
      %13 = vector.load %arg7[%c0_11, %c0_12] : memref<8x64xf32, #tpu.memory_space<vmem>>, vector<8x64xf32>
      tpu.vector_store %arg7[%c0_11, %c0_12], %12 {strides = array<i32>} : memref<8x64xf32, #tpu.memory_space<vmem>>, vector<8x64xf32>,
    } else {
    }
    %c0 = arith.constant 0 : index
    %c0_1 = arith.constant 0 : index
    %3 = vector.load %arg7[%c0, %c0_1] : memref<8x64xf32, #tpu.memory_space<vmem>>, vector<8x64xf32>
    %c0_2 = arith.constant 0 : index
    %c0_3 = arith.constant 0 : index
    %4 = vector.load %arg3[%c0_2, %c0_3] : memref<8x32xf32, #tpu.memory_space<vmem>>, vector<8x32xf32>
    %c0_4 = arith.constant 0 : index
    %c0_5 = arith.constant 0 : index
    %5 = vector.load %arg4[%c0_4, %c0_5] : memref<32x64xf32, #tpu.memory_space<vmem>>, vector<32x64xf32>
    %cst = arith.constant dense<0.000000e+00> : vector<8x64xf32>
    %6 = tpu.matmul %4, %5, %cst {dimension_numbers = #tpu.dot_dimension_numbers<[1], [0], [0], [1], [0, 0, 1, 1], [], []>} : vector<8x32xf32>, vector<32x64xf32>, vector<8x64xf32> -> vector<8x64xf32>
    %7 = arith.addf %3, %6 : vector<8x64xf32>
    %c0_6 = arith.constant 0 : index
    %c0_7 = arith.constant 0 : index
    %8 = vector.load %arg7[%c0_6, %c0_7] : memref<8x64xf32, #tpu.memory_space<vmem>>, vector<8x64xf32>
    tpu.vector_store %arg7[%c0_6, %c0_7], %7 {strides = array<i32>} : memref<8x64xf32, #tpu.memory_space<vmem>>, vector<8x64xf32>,
    %c0_i32_8 = arith.constant 0 : i32
    %9 = arith.cmpi eq, %arg2, %c0_i32_8 : i32
    %10 = arith.extui %9 : i1 to i32
    %c0_i32_9 = arith.constant 0 : i32
    %11 = arith.cmpi ne, %10, %c0_i32_9 : i32
    scf.if %11 {
      %c0_10 = arith.constant 0 : index
      %c0_11 = arith.constant 0 : index
      %12 = vector.load %arg7[%c0_10, %c0_11] : memref<8x64xf32, #tpu.memory_space<vmem>>, vector<8x64xf32>
      %c0_12 = arith.constant 0 : index
      %c0_13 = arith.constant 0 : index
      %13 = vector.load %arg5[%c0_12, %c0_13] : memref<1x64xf32, #tpu.memory_space<vmem>>, vector<1x64xf32>
      %14 = vector.broadcast %13 : vector<1x64xf32> to vector<8x64xf32>
      %15 = arith.addf %12, %14 : vector<8x64xf32>
      %cst_14 = arith.constant 5.000000e-01 : f32
      %16 = vector.broadcast %cst_14 : f32 to vector<8x64xf32>
      %17 = arith.mulf %15, %16 : vector<8x64xf32>
      %cst_15 = arith.constant 0.707106769 : f32
      %18 = vector.broadcast %cst_15 : f32 to vector<8x64xf32>
      %19 = arith.mulf %15, %18 : vector<8x64xf32>
      %20 = math.erf %19 : vector<8x64xf32>
      %cst_16 = arith.constant 1.000000e+00 : f32
      %21 = vector.broadcast %cst_16 : f32 to vector<8x64xf32>
      %22 = arith.addf %21, %20 : vector<8x64xf32>
      %23 = arith.mulf %17, %22 : vector<8x64xf32>
      %c0_17 = arith.constant 0 : index
      %c0_18 = arith.constant 0 : index
      %24 = vector.load %arg6[%c0_17, %c0_18] : memref<8x64xf32, #tpu.memory_space<vmem>>, vector<8x64xf32>
      tpu.vector_store %arg6[%c0_17, %c0_18], %23 {strides = array<i32>} : memref<8x64xf32, #tpu.memory_space<vmem>>, vector<8x64xf32>,
    } else {
    }
    return
  }
  func.func @transform_0(%arg0: i32, %arg1: i32, %arg2: i32) -> (i32, i32) {
    %c0_i32 = arith.constant 0 : i32
    return %arg0, %arg2 : i32, i32
  }
  func.func @transform_1(%arg0: i32, %arg1: i32, %arg2: i32) -> (i32, i32) {
    %c0_i32 = arith.constant 0 : i32
    return %arg2, %arg1 : i32, i32
  }
  func.func @transform_2(%arg0: i32, %arg1: i32, %arg2: i32) -> (i32, i32) {
    %c0_i32 = arith.constant 0 : i32
    %c0_i32_0 = arith.constant 0 : i32
    return %c0_i32, %arg1 : i32, i32
  }
  func.func @transform_3(%arg0: i32, %arg1: i32, %arg2: i32) -> (i32, i32) {
    %c0_i32 = arith.constant 0 : i32
    return %arg0, %arg1 : i32, i32
  }
}

</mosaic_0001>

<llo_original>
// kernel: tpu_custom_call.1
$region0: #{tpu_custom_call.1}
  #allocation0 [shape = 'u32[]', space=smem, size = 0x4, offset = 0x4, fixed_abs, tag = 'smem constant byte address 0x4 - core index']
  #allocation1 [shape = 'u32[144,128]{1,0:T(1,128)}', space=vmem, size = 0x12000, scoped, tag = 'internal scratch']
  #allocation2 [shape = 'f32[8,64]{1,0:T(8,128)}', space=vmem, size = 0x1000, scoped, tag = 'scratch operand']
  %s0 = inlined_call_operand.hbm [shape: f32[8,32], index: 0, kind: input, shape index: {}]
  %s1 = inlined_call_operand.hbm [shape: f32[32,64], index: 1, kind: input, shape index: {}]
  %s2 = inlined_call_operand.vmem [shape: f32[1,64], index: 2, kind: input, shape index: {}]
  %s3 = inlined_call_operand.hbm [shape: f32[8,64], index: 3, kind: output, shape index: {}]
  %s4 = sld [smem:[#allocation0]]
  $region38: #{tpu_custom_call.1} parent=0
    _
  %s6 = ssub.s32 1, %s4
  %s7 = scalar_select 0, %s6, %s4
  $region1: #{tpu_custom_call.1} parent=0
    #allocation3 [shape = 'u8[4096]{0}', space=vmem, size = 0x1000, scoped, tag = 'input window, operand 0, single buffered']
    #allocation4 [shape = 's32[1]{0}', space=sflag, size = 0x4, scoped, tag = 'scoped memory for tpu_custom_call.1']
    #allocation5 [shape = 's32[1]{0}', space=sflag, size = 0x4, scoped, tag = 'scoped memory for tpu_custom_call.1']
    #allocation6 [shape = 'u8[16384]{0}', space=vmem, size = 0x4000, scoped, tag = 'input window, operand 1, single buffered']
    #allocation7 [shape = 's32[1]{0}', space=sflag, size = 0x4, scoped, tag = 'scoped memory for tpu_custom_call.1']
    #allocation8 [shape = 'u8[4096]{0}', space=vmem, size = 0x1000, scoped, tag = 'output window, operand 0, single buffered']
    %8 = vsyncpa [#allocation4], 0
    %9 = vsyncpa [#allocation7], 0
    %10 = vsyncpa [#allocation5], 0
    // Predicated region
    $region2: #{tpu_custom_call.1} parent=1 // pred_check
      _
    $region3: #{tpu_custom_call.1} parent=1 // pred_check_branch
      %12 = sbr.rel (0) target = $region5
    $region4: #{tpu_custom_call.1} parent=1 // pred_region
      %s14 = ssub.s32 128, 128
      %15 = vsyncadd [#allocation4], %s14
      %s17 = sshll.u32 [#allocation3], 4
      %s18 = int_to_ptr.vmem [resolvable:$true] %s17
      %20 = dma.hbm_to_vmem [thread:$0]  %s0, 128, %s18, [#allocation4]
    $region5: #{tpu_custom_call.1} parent=1 // pred_fallthru
      _
    // Predicated region
    $region6: #{tpu_custom_call.1} parent=1 // pred_check
      _
    $region7: #{tpu_custom_call.1} parent=1 // pred_check_branch
      %22 = sbr.rel (0) target = $region9
    $region8: #{tpu_custom_call.1} parent=1 // pred_region
      %s24 = ssub.s32 512, 512
      %25 = vsyncadd [#allocation7], %s24
      %s26 = sshll.u32 [#allocation6], 4
      %s27 = int_to_ptr.vmem [resolvable:$true] %s26
      %32 = dma.hbm_to_vmem [thread:$0]  %s1, 512, %s27, [#allocation7], 128, 128, 8
    $region9: #{tpu_custom_call.1} parent=1 // pred_fallthru
      _
    // Predicated region
    $region10: #{tpu_custom_call.1} parent=1 // pred_check
      _
    $region11: #{tpu_custom_call.1} parent=1 // pred_check_branch
      %34 = sbr.rel (0) target = $region13
    $region12: #{tpu_custom_call.1} parent=1 // pred_region
      _
    $region13: #{tpu_custom_call.1} parent=1 // pred_fallthru
      _
    // Predicated region
    $region14: #{tpu_custom_call.1} parent=1 // pred_check
      _
    $region15: #{tpu_custom_call.1} parent=1 // pred_check_branch
      %36 = sbr.rel (0) target = $region17
    $region16: #{tpu_custom_call.1} parent=1 // pred_region
      %37 = dma.done [#allocation4], 128
    $region17: #{tpu_custom_call.1} parent=1 // pred_fallthru
      _
    // Predicated region
    $region18: #{tpu_custom_call.1} parent=1 // pred_check
      _
    $region19: #{tpu_custom_call.1} parent=1 // pred_check_branch
      %39 = sbr.rel (0) target = $region21
    $region20: #{tpu_custom_call.1} parent=1 // pred_region
      %40 = dma.done [#allocation7], 512
    $region21: #{tpu_custom_call.1} parent=1 // pred_fallthru
      _
    %p41 = scmp.eq.s32.totalorder 0, 0
    // Predicated region
    $region22: #{tpu_custom_call.1} parent=1 // pred_check
      %p42 = pneg %p41
    $region23: #{tpu_custom_call.1} parent=1 // pred_check_branch
      %44 = sbr.rel (%p42) target = $region25
    $region24: #{tpu_custom_call.1} parent=1 // pred_region
      %vm45 = vcmask 523264
      %46 = vst.msk [vmem:[#allocation2] sm:$0xff] %vm45, 0.0
    $region25: #{tpu_custom_call.1} parent=1 // pred_fallthru
      _
    %v47 = vld [vmem:[#allocation2] sm:$0xff]
    %v48 = vld [vmem:[#allocation3] sm:$0xff]
    %v49 = vld [vmem:[#allocation6] sm:$0xff]
    %v50 = vld [vmem:[#allocation6 + $0x8] sm:$0xff]
    %v51 = vld [vmem:[#allocation6 + $0x10] sm:$0xff]
    %v52 = vld [vmem:[#allocation6 + $0x18] sm:$0xff]
    %vm53 = vcmask 261120
    %v55 = vsel %vm53, %v48, 0
    %57 = vmatprep.subr.mxu0 0.0
    %58 = vmatpush1.msra.mxu0 %v49
    %59 = vmatprep.subr.mxu0 0.0
    %60 = vmatpush1.msra.mxu0 %v50
    %61 = vmatprep.subr.mxu0 0.0
    %62 = vmatpush1.msra.mxu0 %v51
    %63 = vmatprep.subr.mxu0 0.0
    %64 = vmatpush1.msra.mxu0 %v52
    %65 = vmatprep.subr.mxu0 0.0
    %66 = vmatpush1.msra.mxu0 0.0
    %67 = vmatprep.subr.mxu0 0.0
    %68 = vmatpush1.msra.mxu0 0.0
    %69 = vmatprep.subr.mxu0 0.0
    %70 = vmatpush1.msra.mxu0 0.0
    %71 = vmatprep.subr.mxu0 0.0
    %72 = vmatpush1.msra.mxu0 0.0
    %73 = vmatprep.subr.mxu0 0.0
    %74 = vmatpush1.msra.mxu0 0.0
    %75 = vmatprep.subr.mxu0 0.0
    %76 = vmatpush1.msra.mxu0 0.0
    %77 = vmatprep.subr.mxu0 0.0
    %78 = vmatpush1.msra.mxu0 0.0
    %79 = vmatprep.subr.mxu0 0.0
    %80 = vmatpush1.msra.mxu0 0.0
    %81 = vmatprep.subr.mxu0 0.0
    %82 = vmatpush1.msra.mxu0 0.0
    %83 = vmatprep.subr.mxu0 0.0
    %84 = vmatpush1.msra.mxu0 0.0
    %85 = vmatprep.subr.mxu0 0.0
    %86 = vmatpush1.msra.mxu0 0.0
    %87 = vmatprep.subr.mxu0 0.0
    %88 = vmatpush1.msra.mxu0 0.0
    %89 = vmatprep.subr.mxu0 0.0
    %90 = vmatpush1.msra.mxu0 0.0
    %91 = vmatprep.subr.mxu0 0.0
    %92 = vmatpush1.msra.mxu0 0.0
    %93 = vmatprep.subr.mxu0 0.0
    %94 = vmatpush1.msra.mxu0 0.0
    %95 = vmatprep.subr.mxu0 0.0
    %96 = vmatpush1.msra.mxu0 0.0
    %97 = vmatprep.subr.mxu0 0.0
    %98 = vmatpush1.msra.mxu0 0.0
    %99 = vmatprep.subr.mxu0 0.0
    %100 = vmatpush1.msra.mxu0 0.0
    %101 = vmatprep.subr.mxu0 0.0
    %102 = vmatpush1.msra.mxu0 0.0
    %103 = vmatprep.subr.mxu0 0.0
    %104 = vmatpush1.msra.mxu0 0.0
    %105 = vmatprep.subr.mxu0 0.0
    %106 = vmatpush1.msra.mxu0 0.0
    %107 = vmatprep.subr.mxu0 0.0
    %108 = vmatpush1.msra.mxu0 0.0
    %109 = vmatprep.subr.mxu0 0.0
    %110 = vmatpush1.msra.mxu0 0.0
    %111 = vmatprep.subr.mxu0 0.0
    %112 = vmatpush1.msra.mxu0 0.0
    %113 = vmatprep.subr.mxu0 0.0
    %114 = vmatpush1.msra.mxu0 0.0
    %115 = vmatprep.subr.mxu0 0.0
    %116 = vmatpush1.msra.mxu0 0.0
    %117 = vmatprep.subr.mxu0 0.0
    %118 = vmatpush1.msra.mxu0 0.0
    %119 = vmatprep.subr.mxu0 0.0
    %120 = vmatpush1.msra.mxu0 0.0
    %121 = vmatprep.mubr.f32.mxu0 0.0
    %122 = vmatmul.mubr.f32.gmra.mrb[0].mxu0 %v55
    %v123 = vpop.f32.mrb[0].mxu0
    %v124 = vadd.f32 0.0, %v123
    %v125 = vpop.f32.mrb[0].mxu0
    %126 = vdwg.mxu0
    %v127 = vadd.f32 %v47, %v124
    %vm128 = vcmask 523264
    %129 = vst.msk [vmem:[#allocation2] sm:$0xff] %vm128, %v127
    // Predicated region
    $region26: #{tpu_custom_call.1} parent=1 // pred_check
      %p130 = pneg %p41
    $region27: #{tpu_custom_call.1} parent=1 // pred_check_branch
      %132 = sbr.rel (%p130) target = $region29
    $region28: #{tpu_custom_call.1} parent=1 // pred_region
      %v133 = vld [vmem:[#allocation2] sm:$0xff]
      %v134 = vld [vmem:[%s2] sm:$0x1]
      %v136 = vlaneseq
      %v137 = vshrl.u32 %v136, 7
      %v138 = vsub.s32 0, %v137
      %v139 = vrot.slane %v134, %v138
      %v141 = vadd.f32 %v133, %v139
      %v142 = vmul.f32 %v141, 0.5
      %v143 = vmul.f32 %v141, 0.70710677
      %v144 = verf.f32.pop %v143
      %v145 = vadd.f32 %v144, 1.0
      %v146 = vmul.f32 %v142, %v145
      %147 = vst.msk [vmem:[#allocation8] sm:$0xff] %vm128, %v146
    $region29: #{tpu_custom_call.1} parent=1 // pred_fallthru
      _
    // Predicated region
    $region30: #{tpu_custom_call.1} parent=1 // pred_check
      _
    $region31: #{tpu_custom_call.1} parent=1 // pred_check_branch
      %149 = sbr.rel (0) target = $region33
    $region32: #{tpu_custom_call.1} parent=1 // pred_region
      %s151 = ssub.s32 128, 128
      %152 = vsyncadd [#allocation5], %s151
      %s154 = sshll.u32 [#allocation8], 4
      %s155 = int_to_ptr.vmem [resolvable:$true] %s154
      %157 = dma.vmem_to_hbm [thread:$0]  %s155, 128, %s3, [#allocation5]
    $region33: #{tpu_custom_call.1} parent=1 // pred_fallthru
      _
    // Predicated region
    $region34: #{tpu_custom_call.1} parent=1 // pred_check
      _
    $region35: #{tpu_custom_call.1} parent=1 // pred_check_branch
      %159 = sbr.rel (0) target = $region37
    $region36: #{tpu_custom_call.1} parent=1 // pred_region
      %160 = dma.done [#allocation5], 128
    $region37: #{tpu_custom_call.1} parent=1 // pred_fallthru
      _
    %161 = vsyncpa [#allocation4], 1
    %162 = vsyncpa [#allocation7], 1
    %163 = vsyncpa [#allocation5], 1

</llo_original>
